<compile_context>
chip_gen: v5e
topology: v5e:2x2
jax: 0.10.0
libtpu: 0.0.40
codegen_flags: <defaults>
</compile_context>

<pallas_src>
import functools

import jax
import jax.numpy as jnp
from jax.experimental import pallas as pl
from jax.experimental.pallas import tpu as pltpu


def _round_up(v, m):
    return ((v + m - 1) // m) * m


def _vmem_budget_bytes():
    """~75% of physical VMEM per TensorCore (v7x: 64 MiB -> 48; v5e/v6e: 128 -> 96)."""
    cap = None
    try:
        info = pltpu.get_tpu_info()
        for name in ("vmem_capacity_bytes", "vmem_size_bytes", "vmem_bytes"):
            val = getattr(info, name, None)
            if val:
                cap = int(val)
                break
    except Exception:
        cap = None
    if not cap:
        cap = 64 * 1024 * 1024  # conservative default = v7x per-core VMEM
    return (cap * 3) // 4


def _pick_pow2_tile(pref, n128):
    """Largest power-of-two multiple of 128 <= pref whose zero-padding waste on an
    axis of (128-rounded) length n128 stays under 12.5%.  Always >= 128."""
    best = 128
    t = 128
    limit = max(128, min(pref, n128))
    while t <= limit:
        waste = _round_up(n128, t) - n128
        if waste * 8 <= n128:
            best = t
        t *= 2
    return best


# ---------------------------------------------------------------------------
# Stage 1: xw = x @ W          [N, F_in] @ [F_in, F_out] -> [N, F_out]
# ---------------------------------------------------------------------------
def _xw_kernel(x_ref, w_ref, o_ref):
    o_ref[...] = jnp.dot(
        x_ref[...], w_ref[...], preferred_element_type=jnp.float32
    ).astype(o_ref.dtype)


# ---------------------------------------------------------------------------
# Stage 2: out = act(adj @ xw + bias), tiled (row tiles i) x (reduction tiles k)
# ---------------------------------------------------------------------------
def _adj_kernel(adj_ref, xw_ref, b_ref, o_ref, *scratch,
                activation, tk, compute_dtype, xw_resident, use_acc):
    # If the output is already f32, accumulate directly into the resident
    # output block (its block index is constant across k) -> no scratch needed.
    acc_ref = scratch[0] if use_acc else o_ref
    k = pl.program_id(1)

    @pl.when(k == 0)
    def _():
        acc_ref[...] = jnp.zeros_like(acc_ref)

    a = adj_ref[...]
    if a.dtype != compute_dtype:
        # 0/1 adjacency cast in VMEM -> HBM stream stays narrow / uncopied.
        a = a.astype(compute_dtype)

    if xw_resident:
        start = pl.multiple_of(k * tk, tk)
        xw_blk = xw_ref[pl.ds(start, tk), :]
    else:
        xw_blk = xw_ref[...]

    acc_ref[...] += jnp.dot(a, xw_blk, preferred_element_type=jnp.float32)

    @pl.when(k == pl.num_programs(1) - 1)
    def _():
        out = acc_ref[...] + b_ref[...]
        if activation == "relu":
            out = jnp.maximum(out, 0.0)
        else:  # "sigmoid"
            out = jax.nn.sigmoid(out)
        o_ref[...] = out.astype(o_ref.dtype)


def graph_convolution(x, adj, weight, bias=None, activation="relu", *,
                      tm=512, tk=None, use_bf16=True):
    """out = act(adj @ x @ weight [+ bias]), computed with Pallas TPU kernels."""
    if activation not in ("relu", "sigmoid"):
        raise ValueError(f"activation must be 'relu' or 'sigmoid', got {activation!r}")

    n, f_in = x.shape
    f_out = weight.shape[1]
    assert adj.shape == (n, n)
    assert weight.shape[0] == f_in

    out_dtype = jnp.dtype(x.dtype)
    in_dtype = jnp.dtype(jnp.bfloat16) if use_bf16 else out_dtype
    xw_isz = in_dtype.itemsize

    # Lane-dense feature dims (multiples of 128): unmasked vector stores.
    f_in_p = _round_up(f_in, 128)
    f_out_p = _round_up(f_out, 128)
    n128 = _round_up(n, 128)

    budget = _vmem_budget_bytes()

    # ---- stage-2 tile selection ---------------------------------------------
    tm_pref = tm
    if n128 >= 256:  # ensure >= 2 row tiles so both v7x TensorCores get work
        tm_pref = min(tm_pref, (n128 // 2 // 128) * 128)
    tm = _pick_pow2_tile(tm_pref, n128)

    # Reserve VMEM for resident xw, the resident/double-buffered output block,
    # the (possible) accumulator and compiler slack; the rest feeds the
    # double-buffered adj stream (the dominant HBM traffic).
    xw_reserve = 2 * n128 * f_out_p * xw_isz
    fixed = xw_reserve + 3 * tm * f_out_p * 4 + (4 << 20)
    adj_budget = max(budget - fixed, 2 * tm * 128 * 4)
    tk_cap = adj_budget // (2 * tm * 2)                 # sized for bf16 adj tiles
    tk_pref = tk if tk is not None else 1 << 30
    tk = _pick_pow2_tile(min(tk_pref, tk_cap, 8192), n128)

    # ---- adjacency handling: avoid materializing a padded copy when possible
    adj_dtype = jnp.dtype(adj.dtype)
    no_copy = (n % tm == 0) and (n % tk == 0) and adj_dtype in (
        jnp.dtype(jnp.bfloat16), jnp.dtype(jnp.float32))
    if no_copy:
        elem = adj_dtype.itemsize
        cast_extra = 0 if adj_dtype == in_dtype else 2   # in-VMEM bf16 cast temp
        while tk > 128 and tm * tk * (2 * elem + cast_extra) > adj_budget:
            tk //= 2                                     # still divides n (pow2)
        adj_in = adj                                     # streamed as-is from HBM
        n_rows_pad, n_k_pad = n, n
    else:
        # Padding needed: materialize one padded bf16 copy (zeros are exact).
        n_rows_pad = _round_up(n, tm)
        n_k_pad = _round_up(n, tk)
        adj_in = jnp.zeros((n_rows_pad, n_k_pad), in_dtype).at[:n, :n].set(
            adj.astype(in_dtype))

    # xw resident in VMEM when it comfortably fits (it nearly always does).
    xw_resident = 2 * n_k_pad * f_out_p * xw_isz <= budget // 3

    # Zero-padded small operands (padding contributes exact zeros).
    x_p = jnp.zeros((n_k_pad, f_in_p), in_dtype).at[:n, :f_in].set(x.astype(in_dtype))
    w_p = jnp.zeros((f_in_p, f_out_p), in_dtype).at[:f_in, :f_out].set(
        weight.astype(in_dtype))
    b_p = jnp.zeros((1, f_out_p), jnp.float32)
    if bias is not None:
        b_p = b_p.at[0, :f_out].set(bias.astype(jnp.float32))

    # ---- stage 1: xw = x @ W (row-tiled, W resident) -------------------------
    tm1 = min(512, tk)   # power-of-two multiple of 128 dividing n_k_pad
    while tm1 > 128 and 2 * tm1 * (f_in_p + f_out_p) * xw_isz > max(
            budget - 2 * f_in_p * f_out_p * xw_isz - (2 << 20), 1 << 20):
        tm1 //= 2
    # TODO(synk): tile the f_in reduction in stage 1 if f_in_p * f_out_p ever
    # outgrows VMEM (not the case for typical GCN feature widths).

    xw = pl.pallas_call(
        _xw_kernel,
        out_shape=jax.ShapeDtypeStruct((n_k_pad, f_out_p), in_dtype),
        grid=(n_k_pad // tm1,),
        in_specs=[
            pl.BlockSpec((tm1, f_in_p), lambda i: (i, 0)),
            pl.BlockSpec((f_in_p, f_out_p), lambda i: (0, 0)),
        ],
        out_specs=pl.BlockSpec((tm1, f_out_p), lambda i: (i, 0)),
        compiler_params=pltpu.CompilerParams(
            dimension_semantics=("parallel",),
            vmem_limit_bytes=budget,
        ),
    )(x_p, w_p)

    # ---- stage 2: out = act(adj @ xw + bias) ---------------------------------
    # TODO(synk): for genuinely sparse adjacency, a PrefetchScalarGridSpec with
    # per-row nonzero-block indices could skip all-zero adj tiles.
    use_acc = out_dtype != jnp.dtype(jnp.float32)
    kernel = functools.partial(
        _adj_kernel, activation=activation, tk=tk,
        compute_dtype=in_dtype, xw_resident=xw_resident, use_acc=use_acc)

    if xw_resident:
        xw_spec = pl.BlockSpec((n_k_pad, f_out_p), lambda i, k: (0, 0))
    else:
        xw_spec = pl.BlockSpec((tk, f_out_p), lambda i, k: (k, 0))

    out_p = pl.pallas_call(
        kernel,
        out_shape=jax.ShapeDtypeStruct((n_rows_pad, f_out_p), out_dtype),
        grid=(n_rows_pad // tm, n_k_pad // tk),
        in_specs=[
            pl.BlockSpec((tm, tk), lambda i, k: (i, k)),       # adj (dominant stream)
            xw_spec,                                           # xw (resident or tiled)
            pl.BlockSpec((1, f_out_p), lambda i, k: (0, 0)),   # bias row (resident)
        ],
        out_specs=pl.BlockSpec((tm, f_out_p), lambda i, k: (i, 0)),
        scratch_shapes=(
            [pltpu.VMEM((tm, f_out_p), jnp.float32)] if use_acc else ()),
        compiler_params=pltpu.CompilerParams(
            dimension_semantics=("parallel", "arbitrary"),
            vmem_limit_bytes=budget,
        ),
    )(adj_in, xw, b_p)

    return out_p[:n, :f_out]


if __name__ == "__main__":
    key = jax.random.PRNGKey(0)
    k_x, k_adj, k_w, k_x2, k_adj2, k_w2, k_b2 = jax.random.split(key, 7)

    # ---- test 1: tiny layer, relu, no bias (module defaults) ----------------
    N, F_IN, F_OUT = 8, 32, 16
    x = jax.random.normal(k_x, (N, F_IN), dtype=jnp.float32)
    a = (jax.random.uniform(k_adj, (N, N)) > 0.5).astype(jnp.float32)
    adj = jnp.clip(a + a.T + jnp.eye(N, dtype=jnp.float32), 0.0, 1.0)
    weight = jax.random.normal(k_w, (F_IN, F_OUT), dtype=jnp.float32)

    out = jax.block_until_ready(graph_convolution(x, adj, weight))
    assert out.shape == (N, F_OUT)

    # Reference mirroring kernel numerics (bf16 inputs, f32 accumulation).
    xb = x.astype(jnp.bfloat16).astype(jnp.float32)
    wb = weight.astype(jnp.bfloat16).astype(jnp.float32)
    xw_ref = (xb @ wb).astype(jnp.bfloat16).astype(jnp.float32)
    ref = jnp.maximum(adj @ xw_ref, 0.0)
    assert jnp.allclose(out, ref, atol=5e-2, rtol=1e-2), "mismatch vs bf16 reference"
    ref_f32 = jnp.maximum(adj @ x @ weight, 0.0)
    assert jnp.allclose(out, ref_f32, atol=1.0, rtol=1e-1), "mismatch vs f32 reference"

    # ---- test 2: 128-multiple N (no-copy adj path, resident xw, k>1, 2 row
    # tiles for megacore), sigmoid + bias -------------------------------------
    N2, F_IN2, F_OUT2 = 256, 64, 32
    x2 = jax.random.normal(k_x2, (N2, F_IN2), dtype=jnp.float32)
    a2 = (jax.random.uniform(k_adj2, (N2, N2)) > 0.5).astype(jnp.float32)
    adj2 = jnp.clip(a2 + a2.T + jnp.eye(N2, dtype=jnp.float32), 0.0, 1.0)
    w2 = jax.random.normal(k_w2, (F_IN2, F_OUT2), dtype=jnp.float32)
    b2 = 0.1 * jax.random.normal(k_b2, (F_OUT2,), dtype=jnp.float32)

    out2 = jax.block_until_ready(
        graph_convolution(x2, adj2, w2, bias=b2, activation="sigmoid", tk=128))
    assert out2.shape == (N2, F_OUT2)

    xb2 = x2.astype(jnp.bfloat16).astype(jnp.float32)
    wb2 = w2.astype(jnp.bfloat16).astype(jnp.float32)
    xw_ref2 = (xb2 @ wb2).astype(jnp.bfloat16).astype(jnp.float32)
    ref2 = jax.nn.sigmoid(adj2 @ xw_ref2 + b2)
    assert jnp.allclose(out2, ref2, atol=5e-2, rtol=1e-2), "mismatch vs bf16 reference (test 2)"

    print("KERNEL_OK")
</pallas_src>

<mosaic_0001>
module attributes {stable_mosaic.version = 11 : i64} {
  func.func @_xw_kernel(%arg0: i32, %arg1: memref<128x128xbf16, #tpu.memory_space<vmem>>, %arg2: memref<128x128xbf16, #tpu.memory_space<vmem>>, %arg3: memref<128x128xbf16, #tpu.memory_space<vmem>>) attributes {dimension_semantics = [#tpu.dimension_semantics<parallel>], iteration_bounds = array<i64: 1>, scalar_prefetch = 0 : i64, scratch_operands = 0 : i64, tpu.core_type = #tpu.core_type<tc>, window_params = [{transform_indices = @transform_0, window_bounds = array<i64: 128, 128>}, {pipeline_mode = #tpu.pipeline_mode<synchronous>, transform_indices = @transform_1, window_bounds = array<i64: 128, 128>}, {transform_indices = @transform_2, window_bounds = array<i64: 128, 128>}]} {
    %c0 = arith.constant 0 : index
    %c0_0 = arith.constant 0 : index
    %0 = vector.load %arg1[%c0, %c0_0] : memref<128x128xbf16, #tpu.memory_space<vmem>>, vector<128x128xbf16>
    %c0_1 = arith.constant 0 : index
    %c0_2 = arith.constant 0 : index
    %1 = vector.load %arg2[%c0_1, %c0_2] : memref<128x128xbf16, #tpu.memory_space<vmem>>, vector<128x128xbf16>
    %cst = arith.constant dense<0.000000e+00> : vector<128x128xf32>
    %2 = tpu.matmul %0, %1, %cst {dimension_numbers = #tpu.dot_dimension_numbers<[1], [0], [0], [1], [0, 0, 1, 1], [], []>} : vector<128x128xbf16>, vector<128x128xbf16>, vector<128x128xf32> -> vector<128x128xf32>
    %3 = arith.truncf %2 : vector<128x128xf32> to vector<128x128xbf16>
    %c0_3 = arith.constant 0 : index
    %c0_4 = arith.constant 0 : index
    %4 = vector.load %arg3[%c0_3, %c0_4] : memref<128x128xbf16, #tpu.memory_space<vmem>>, vector<128x128xbf16>
    tpu.vector_store %arg3[%c0_3, %c0_4], %3 {strides = array<i32>} : memref<128x128xbf16, #tpu.memory_space<vmem>>, vector<128x128xbf16>,
    return
  }
  func.func @transform_0(%arg0: i32) -> (i32, i32) {
    %c0_i32 = arith.constant 0 : i32
    %c0_i32_0 = arith.constant 0 : i32
    return %arg0, %c0_i32 : i32, i32
  }
  func.func @transform_1(%arg0: i32) -> (i32, i32) {
    %c0_i32 = arith.constant 0 : i32
    %c0_i32_0 = arith.constant 0 : i32
    %c0_i32_1 = arith.constant 0 : i32
    return %c0_i32, %c0_i32_0 : i32, i32
  }
  func.func @transform_2(%arg0: i32) -> (i32, i32) {
    %c0_i32 = arith.constant 0 : i32
    %c0_i32_0 = arith.constant 0 : i32
    return %arg0, %c0_i32 : i32, i32
  }
}

</mosaic_0001>

<llo_original>
// kernel: tpu_custom_call.1
$region0: #{tpu_custom_call.1}
  #allocation0 [shape = 'u32[]', space=smem, size = 0x4, offset = 0x4, fixed_abs, tag = 'smem constant byte address 0x4 - core index']
  #allocation1 [shape = 'u32[72,128]{1,0:T(1,128)}', space=vmem, size = 0x9000, scoped, tag = 'internal scratch']
  %s0 = inlined_call_operand.hbm [shape: bf16[128,128], index: 0, kind: input, shape index: {}]
  %s1 = inlined_call_operand.hbm [shape: bf16[128,128], index: 1, kind: input, shape index: {}]
  %s2 = inlined_call_operand.hbm [shape: bf16[128,128], index: 2, kind: output, shape index: {}]
  %s3 = sld [smem:[#allocation0]]
  $region26: #{tpu_custom_call.1} parent=0
    _
  %s5 = ssub.s32 1, %s3
  %s6 = scalar_select 0, %s5, %s3
  $region1: #{tpu_custom_call.1} parent=0
    #allocation2 [shape = 'u8[32768]{0}', space=vmem, size = 0x8000, scoped, tag = 'input window, operand 0, single buffered']
    #allocation3 [shape = 's32[1]{0}', space=sflag, size = 0x4, scoped, tag = 'scoped memory for tpu_custom_call.1']
    #allocation4 [shape = 's32[1]{0}', space=sflag, size = 0x4, scoped, tag = 'scoped memory for tpu_custom_call.1']
    #allocation5 [shape = 'u8[32768]{0}', space=vmem, size = 0x8000, scoped, tag = 'input window, operand 1, single buffered']
    #allocation6 [shape = 's32[1]{0}', space=sflag, size = 0x4, scoped, tag = 'scoped memory for tpu_custom_call.1']
    #allocation7 [shape = 'u8[32768]{0}', space=vmem, size = 0x8000, scoped, tag = 'output window, operand 0, single buffered']
    %7 = vsyncpa [#allocation3], 0
    %8 = vsyncpa [#allocation6], 0
    %9 = vsyncpa [#allocation4], 0
    // Predicated region
    $region2: #{tpu_custom_call.1} parent=1 // pred_check
      _
    $region3: #{tpu_custom_call.1} parent=1 // pred_check_branch
      %11 = sbr.rel (0) target = $region5
    $region4: #{tpu_custom_call.1} parent=1 // pred_region
      %13 = vsyncadd [#allocation3], 0
      %s14 = sshll.u32 %s0, 4
      %s15 = int_to_ptr.hbm [resolvable:$true] %s14
      %s16 = sshll.u32 [#allocation2], 4
      %s17 = int_to_ptr.vmem [resolvable:$true] %s16
      %22 = dma.hbm_to_vmem [thread:$0]  %s15, 1024, %s17, [#allocation3], 64, 64, 4
    $region5: #{tpu_custom_call.1} parent=1 // pred_fallthru
      _
    // Predicated region
    $region6: #{tpu_custom_call.1} parent=1 // pred_check
      _
    $region7: #{tpu_custom_call.1} parent=1 // pred_check_branch
      %24 = sbr.rel (0) target = $region9
    $region8: #{tpu_custom_call.1} parent=1 // pred_region
      %26 = vsyncadd [#allocation6], 0
      %s27 = sshll.u32 %s1, 4
      %s28 = int_to_ptr.hbm [resolvable:$true] %s27
      %s29 = sshll.u32 [#allocation5], 4
      %s30 = int_to_ptr.vmem [resolvable:$true] %s29
      %35 = dma.hbm_to_vmem [thread:$0]  %s28, 1024, %s30, [#allocation6], 64, 64, 4
    $region9: #{tpu_custom_call.1} parent=1 // pred_fallthru
      _
    // Predicated region
    $region10: #{tpu_custom_call.1} parent=1 // pred_check
      _
    $region11: #{tpu_custom_call.1} parent=1 // pred_check_branch
      %37 = sbr.rel (0) target = $region13
    $region12: #{tpu_custom_call.1} parent=1 // pred_region
      %39 = dma.done [#allocation3], 1024
    $region13: #{tpu_custom_call.1} parent=1 // pred_fallthru
      _
    // Predicated region
    $region14: #{tpu_custom_call.1} parent=1 // pred_check
      _
    $region15: #{tpu_custom_call.1} parent=1 // pred_check_branch
      %41 = sbr.rel (0) target = $region17
    $region16: #{tpu_custom_call.1} parent=1 // pred_region
      %43 = dma.done [#allocation6], 1024
    $region17: #{tpu_custom_call.1} parent=1 // pred_fallthru
      _
    %v44 = vld [vmem:[#allocation2] sm:$0xf]
    %v45 = vld [vmem:[#allocation2 + $0x4] sm:$0xf]
    %v46 = vld [vmem:[#allocation2 + $0x8] sm:$0xf]
    %v47 = vld [vmem:[#allocation2 + $0xc] sm:$0xf]
    %v48 = vld [vmem:[#allocation2 + $0x10] sm:$0xf]
    %v49 = vld [vmem:[#allocation2 + $0x14] sm:$0xf]
    %v50 = vld [vmem:[#allocation2 + $0x18] sm:$0xf]
    %v51 = vld [vmem:[#allocation2 + $0x1c] sm:$0xf]
    %v52 = vld [vmem:[#allocation2 + $0x20] sm:$0xf]
    %v53 = vld [vmem:[#allocation2 + $0x24] sm:$0xf]
    %v54 = vld [vmem:[#allocation2 + $0x28] sm:$0xf]
    %v55 = vld [vmem:[#allocation2 + $0x2c] sm:$0xf]
    %v56 = vld [vmem:[#allocation2 + $0x30] sm:$0xf]
    %v57 = vld [vmem:[#allocation2 + $0x34] sm:$0xf]
    %v58 = vld [vmem:[#allocation2 + $0x38] sm:$0xf]
    %v59 = vld [vmem:[#allocation2 + $0x3c] sm:$0xf]
    %v60 = vld [vmem:[#allocation5] sm:$0xf]
    %v61 = vld [vmem:[#allocation5 + $0x4] sm:$0xf]
    %v62 = vld [vmem:[#allocation5 + $0x8] sm:$0xf]
    %v63 = vld [vmem:[#allocation5 + $0xc] sm:$0xf]
    %v64 = vld [vmem:[#allocation5 + $0x10] sm:$0xf]
    %v65 = vld [vmem:[#allocation5 + $0x14] sm:$0xf]
    %v66 = vld [vmem:[#allocation5 + $0x18] sm:$0xf]
    %v67 = vld [vmem:[#allocation5 + $0x1c] sm:$0xf]
    %v68 = vld [vmem:[#allocation5 + $0x20] sm:$0xf]
    %v69 = vld [vmem:[#allocation5 + $0x24] sm:$0xf]
    %v70 = vld [vmem:[#allocation5 + $0x28] sm:$0xf]
    %v71 = vld [vmem:[#allocation5 + $0x2c] sm:$0xf]
    %v72 = vld [vmem:[#allocation5 + $0x30] sm:$0xf]
    %v73 = vld [vmem:[#allocation5 + $0x34] sm:$0xf]
    %v74 = vld [vmem:[#allocation5 + $0x38] sm:$0xf]
    %v75 = vld [vmem:[#allocation5 + $0x3c] sm:$0xf]
    %v92 = vunpack.c.l.b16 %v44
    %v93 = vunpack.c.l.b16 %v45
    %v94 = vunpack.c.l.b16 %v46
    %v95 = vunpack.c.l.b16 %v47
    %v96 = vunpack.c.l.b16 %v48
    %v97 = vunpack.c.l.b16 %v49
    %v98 = vunpack.c.l.b16 %v50
    %v99 = vunpack.c.l.b16 %v51
    %v100 = vunpack.c.l.b16 %v52
    %v101 = vunpack.c.l.b16 %v53
    %v102 = vunpack.c.l.b16 %v54
    %v103 = vunpack.c.l.b16 %v55
    %v104 = vunpack.c.l.b16 %v56
    %v105 = vunpack.c.l.b16 %v57
    %v106 = vunpack.c.l.b16 %v58
    %v107 = vunpack.c.l.b16 %v59
    %v108 = vpack.c.b16 %v93, %v92
    %v109 = vpack.c.b16 %v95, %v94
    %v110 = vpack.c.b16 %v97, %v96
    %v111 = vpack.c.b16 %v99, %v98
    %v112 = vpack.c.b16 %v101, %v100
    %v113 = vpack.c.b16 %v103, %v102
    %v114 = vpack.c.b16 %v105, %v104
    %v115 = vpack.c.b16 %v107, %v106
    %v140 = vunpack.c.l.b16 %v60
    %v141 = vunpack.c.l.b16 %v61
    %v142 = vunpack.c.l.b16 %v62
    %v143 = vunpack.c.l.b16 %v63
    %v144 = vunpack.c.l.b16 %v64
    %v145 = vunpack.c.l.b16 %v65
    %v146 = vunpack.c.l.b16 %v66
    %v147 = vunpack.c.l.b16 %v67
    %v148 = vunpack.c.l.b16 %v68
    %v149 = vunpack.c.l.b16 %v69
    %v150 = vunpack.c.l.b16 %v70
    %v151 = vunpack.c.l.b16 %v71
    %v152 = vunpack.c.l.b16 %v72
    %v153 = vunpack.c.l.b16 %v73
    %v154 = vunpack.c.l.b16 %v74
    %v155 = vunpack.c.l.b16 %v75
    %v156 = vpack.c.b16 %v141, %v140
    %v157 = vpack.c.b16 %v143, %v142
    %v158 = vpack.c.b16 %v145, %v144
    %v159 = vpack.c.b16 %v147, %v146
    %v160 = vpack.c.b16 %v149, %v148
    %v161 = vpack.c.b16 %v151, %v150
    %v162 = vpack.c.b16 %v153, %v152
    %v163 = vpack.c.b16 %v155, %v154
    %172 = vmatpush.bf16.msra.mxu0 %v163
    %173 = vmatpush.bf16.msra.mxu0 %v162
    %174 = vmatpush.bf16.msra.mxu0 %v161
    %175 = vmatpush.bf16.msra.mxu0 %v160
    %176 = vmatpush.bf16.msra.mxu0 %v159
    %177 = vmatpush.bf16.msra.mxu0 %v158
    %178 = vmatpush.bf16.msra.mxu0 %v157
    %179 = vmatpush.bf16.msra.mxu0 %v156
    %180 = vmatmul.bf16.gmra.mxu0 %v108
    %v181 = vpop.f32.mrf.mxu0
    %v182 = vadd.f32 0.0, %v181
    %v183 = vpop.f32.mrf.mxu0
    %v184 = vadd.f32 0.0, %v183
    %185 = vmatmul.bf16.gmra.mxu0 %v109
    %v186 = vpop.f32.mrf.mxu0
    %v187 = vadd.f32 0.0, %v186
    %v188 = vpop.f32.mrf.mxu0
    %v189 = vadd.f32 0.0, %v188
    %190 = vmatmul.bf16.gmra.mxu0 %v110
    %v191 = vpop.f32.mrf.mxu0
    %v192 = vadd.f32 0.0, %v191
    %v193 = vpop.f32.mrf.mxu0
    %v194 = vadd.f32 0.0, %v193
    %195 = vmatmul.bf16.gmra.mxu0 %v111
    %v196 = vpop.f32.mrf.mxu0
    %v197 = vadd.f32 0.0, %v196
    %v198 = vpop.f32.mrf.mxu0
    %v199 = vadd.f32 0.0, %v198
    %200 = vmatmul.bf16.gmra.mxu0 %v112
    %v201 = vpop.f32.mrf.mxu0
    %v202 = vadd.f32 0.0, %v201
    %v203 = vpop.f32.mrf.mxu0
    %v204 = vadd.f32 0.0, %v203
    %205 = vmatmul.bf16.gmra.mxu0 %v113
    %v206 = vpop.f32.mrf.mxu0
    %v207 = vadd.f32 0.0, %v206
    %v208 = vpop.f32.mrf.mxu0
    %v209 = vadd.f32 0.0, %v208
    %210 = vmatmul.bf16.gmra.mxu0 %v114
    %v211 = vpop.f32.mrf.mxu0
    %v212 = vadd.f32 0.0, %v211
    %v213 = vpop.f32.mrf.mxu0
    %v214 = vadd.f32 0.0, %v213
    %215 = vmatmul.bf16.gmra.mxu0 %v115
    %v216 = vpop.f32.mrf.mxu0
    %v217 = vadd.f32 0.0, %v216
    %v218 = vpop.f32.mrf.mxu0
    %v219 = vadd.f32 0.0, %v218
    %220 = vdwg.mxu0
    %v221 = vpack.c.bf16 %v182, %v182
    %v222 = vpack.c.bf16 %v184, %v184
    %v223 = vpack.c.bf16 %v187, %v187
    %v224 = vpack.c.bf16 %v189, %v189
    %v225 = vpack.c.bf16 %v192, %v192
    %v226 = vpack.c.bf16 %v194, %v194
    %v227 = vpack.c.bf16 %v197, %v197
    %v228 = vpack.c.bf16 %v199, %v199
    %v229 = vpack.c.bf16 %v202, %v202
    %v230 = vpack.c.bf16 %v204, %v204
    %v231 = vpack.c.bf16 %v207, %v207
    %v232 = vpack.c.bf16 %v209, %v209
    %v233 = vpack.c.bf16 %v212, %v212
    %v234 = vpack.c.bf16 %v214, %v214
    %v235 = vpack.c.bf16 %v217, %v217
    %v236 = vpack.c.bf16 %v219, %v219
    %237 = vst [vmem:[#allocation7] sm:$0xf] %v221
    %238 = vst [vmem:[#allocation7 + $0x4] sm:$0xf] %v222
    %239 = vst [vmem:[#allocation7 + $0x8] sm:$0xf] %v223
    %240 = vst [vmem:[#allocation7 + $0xc] sm:$0xf] %v224
    %241 = vst [vmem:[#allocation7 + $0x10] sm:$0xf] %v225
    %242 = vst [vmem:[#allocation7 + $0x14] sm:$0xf] %v226
    %243 = vst [vmem:[#allocation7 + $0x18] sm:$0xf] %v227
    %244 = vst [vmem:[#allocation7 + $0x1c] sm:$0xf] %v228
    %245 = vst [vmem:[#allocation7 + $0x20] sm:$0xf] %v229
    %246 = vst [vmem:[#allocation7 + $0x24] sm:$0xf] %v230
    %247 = vst [vmem:[#allocation7 + $0x28] sm:$0xf] %v231
    %248 = vst [vmem:[#allocation7 + $0x2c] sm:$0xf] %v232
    %249 = vst [vmem:[#allocation7 + $0x30] sm:$0xf] %v233
    %250 = vst [vmem:[#allocation7 + $0x34] sm:$0xf] %v234
    %251 = vst [vmem:[#allocation7 + $0x38] sm:$0xf] %v235
    %252 = vst [vmem:[#allocation7 + $0x3c] sm:$0xf] %v236
    // Predicated region
    $region18: #{tpu_custom_call.1} parent=1 // pred_check
      _
    $region19: #{tpu_custom_call.1} parent=1 // pred_check_branch
      %254 = sbr.rel (0) target = $region21
    $region20: #{tpu_custom_call.1} parent=1 // pred_region
      %256 = vsyncadd [#allocation4], 0
      %s257 = sshll.u32 [#allocation7], 4
      %s258 = int_to_ptr.vmem [resolvable:$true] %s257
      %s259 = sshll.u32 %s2, 4
      %s260 = int_to_ptr.hbm [resolvable:$true] %s259
      %265 = dma.vmem_to_hbm [thread:$0]  %s258, 1024, %s260, [#allocation4], 64, 64, 4
    $region21: #{tpu_custom_call.1} parent=1 // pred_fallthru
      _
    // Predicated region
    $region22: #{tpu_custom_call.1} parent=1 // pred_check
      _
    $region23: #{tpu_custom_call.1} parent=1 // pred_check_branch
      %267 = sbr.rel (0) target = $region25
    $region24: #{tpu_custom_call.1} parent=1 // pred_region
      %269 = dma.done [#allocation4], 1024
    $region25: #{tpu_custom_call.1} parent=1 // pred_fallthru
      _
    %270 = vsyncpa [#allocation3], 1
    %271 = vsyncpa [#allocation6], 1
    %272 = vsyncpa [#allocation4], 1

</llo_original>
